<compile_context>
chip_gen: v7x
topology: tpu7x:2x2x1
jax: 0.10.0
libtpu: 0.0.40
codegen_flags: <defaults>
</compile_context>

<pallas_src>
import jax
import jax.numpy as jnp
import numpy as np
from jax.experimental import pallas as pl
from jax.experimental.pallas import tpu as pltpu

CONTEXT_LENGTH = 16   # small stand-in for CLIP's 77
VOCAB = 64
WIDTH = 64            # token-embedding width
EMBED = 128           # output text-feature dim


# ----------------------------------------------------------------------------
# Tokenizer glue (host-side preprocessing; no Pallas equivalent).
# TODO(synk): real CLIP SimpleTokenizer / BPE has no Pallas equivalent; this
#             deterministic char-hash tokenizer reproduces tokenize()'s
#             semantics (sot + tokens + eot, zero-padded to context_length).
# ----------------------------------------------------------------------------
def simple_tokenize(texts, context_length=CONTEXT_LENGTH):
    if isinstance(texts, str):
        texts = [texts]
    sot, eot = 1, 2
    rows = []
    for t in texts:
        toks = [sot] + [3 + (ord(c) % (VOCAB - 3)) for c in t][: context_length - 2] + [eot]
        toks = toks + [0] * (context_length - len(toks))
        rows.append(toks)
    return jnp.asarray(rows, dtype=jnp.int32)          # (N, context_length)


# ----------------------------------------------------------------------------
# Pallas kernel: BG groups (= BG*P prompts) per grid step, one K=W matmul.
# ----------------------------------------------------------------------------
def _make_prompt_kernel(P: int):
    def kernel(x_ref, w_ref, o_ref):
        # x_ref: (BG*P, Kp)  context-pooled token embeddings (bf16, K padded to 128)
        # w_ref: (Kp, D)     projection weight (bf16, zero-padded rows for pad lanes)
        # o_ref: (BG, D)     normalized per-(state,class) text features (f32)
        BG = o_ref.shape[0]
        D = o_ref.shape[1]

        # encode_text: linear projection on the MXU, f32 accumulation.
        emb = jnp.dot(x_ref[...], w_ref[...],
                      preferred_element_type=jnp.float32)            # (BG*P, D)

        # class_embeddings /= class_embeddings.norm(dim=-1, keepdim=True)
        emb = emb * jax.lax.rsqrt(
            jnp.sum(emb * emb, axis=-1, keepdims=True) + 1e-12)      # rsqrt -> EUP

        # class_embedding = class_embeddings.mean(dim=0) per group.  The 1/P
        # scale cancels in the final normalization, so a plain sum over the P
        # axis suffices; the reshape keeps the lane dim (D) untouched (free).
        grp = jnp.sum(emb.reshape(BG, P, D), axis=1)                 # (BG, D)

        # class_embedding /= class_embedding.norm()
        grp = grp * jax.lax.rsqrt(
            jnp.sum(grp * grp, axis=-1, keepdims=True) + 1e-12)
        o_ref[...] = grp.astype(o_ref.dtype)
    return kernel


def encode_prompt_pallas(x_emb, w_proj, *, group_block=None):
    """x_emb: (G, P, L, W) f32, w_proj: (W, D) f32 -> (G, D) f32."""
    G, P, L, W = x_emb.shape
    D = w_proj.shape[1]

    # --- LHS pooling in the wrapper (keeps kernel contraction at K = W) -----
    x_pool = jnp.mean(x_emb.astype(jnp.float32), axis=2).reshape(G * P, W)  # (G*P, W)

    # Zero-pad K up to a multiple of 128 so the matmul LHS is lane-dense;
    # padded lanes hit zero-padded weight rows, contributing nothing.
    Kp = max(128, ((W + 127) // 128) * 128)
    w_pad = w_proj.astype(jnp.float32)
    if Kp != W:
        x_pool = jnp.pad(x_pool, ((0, 0), (0, Kp - W)))
        w_pad = jnp.pad(w_pad, ((0, Kp - W), (0, 0)))

    # bf16 operands -> native MXU rate on v5e/v6e/v7x + half the DMA bytes.
    x_bf = x_pool.astype(jnp.bfloat16)                  # (G*P, Kp)
    w_bf = w_pad.astype(jnp.bfloat16)                   # (Kp, D)

    # --- group blocking ------------------------------------------------------
    if group_block is None:
        # v7x (2 TCs): prefer >=2 grid steps with group_block % 8 == 0 so the
        # "parallel" axis shards across cores.  Single-TC v5e/v6e and toy
        # sizes: one big block (per-step overhead ~0.35 us, fill the MXU).
        if G >= 16 and (G // 2) % 8 == 0:
            group_block = G // 2
        else:
            group_block = G
    assert G % group_block == 0, "group_block must divide G"
    assert group_block == G or group_block % 8 == 0, \
        "partial blocks must be multiples of 8 sublanes"
    steps = G // group_block
    BGP = group_block * P

    # --- VMEM budget / cost hint --------------------------------------------
    bytes_x_blk = BGP * Kp * 2              # bf16 input block
    bytes_w = Kp * D * 2                    # bf16 resident weight
    bytes_o_blk = group_block * D * 4       # f32 output block
    bytes_interm = BGP * D * 4              # f32 emb intermediate (headroom)
    vmem_needed = 2 * bytes_x_blk + 2 * bytes_w + 2 * bytes_o_blk + 2 * bytes_interm
    vmem_limit = int(min(64 << 20, max(16 << 20, 2 * vmem_needed)))

    cost = pl.CostEstimate(
        flops=2 * G * P * Kp * D,
        transcendentals=G * P + G,                                  # rsqrt count
        bytes_accessed=x_bf.size * 2 + w_bf.size * 2 * steps + G * D * 4,
    )

    def _build(weight_pipeline_mode):
        if weight_pipeline_mode is None:
            w_spec = pl.BlockSpec((Kp, D), lambda g: (0, 0))
        else:
            # Constant index_map => never re-fetched; single-buffer it to save
            # one weight copy of VMEM (biggest win on v7x's 64 MiB).
            w_spec = pl.BlockSpec((Kp, D), lambda g: (0, 0),
                                  pipeline_mode=weight_pipeline_mode)
        return pl.pallas_call(
            _make_prompt_kernel(P),
            out_shape=jax.ShapeDtypeStruct((G, D), jnp.float32),
            grid=(steps,),
            in_specs=[
                pl.BlockSpec((BGP, Kp), lambda g: (g, 0)),
                w_spec,
            ],
            out_specs=pl.BlockSpec((group_block, D), lambda g: (g, 0)),
            compiler_params=pltpu.CompilerParams(
                dimension_semantics=("parallel",),
                vmem_limit_bytes=vmem_limit),
            cost_estimate=cost,
        )

    try:
        out = _build(pl.Buffered(1))(x_bf, w_bf)
    except Exception:
        # Fallback if this jax version rejects single-buffered pipeline_mode.
        out = _build(None)(x_bf, w_bf)
    return out


# ----------------------------------------------------------------------------
# PromptEncoder (JAX): builds prompts, tokenizes, embeds, runs the kernel once;
# __call__() returns the precomputed buffer — same semantics as the module.
# ----------------------------------------------------------------------------
class PromptEncoder:
    def __init__(self, class_names, prompt_normal, prompt_abnormal,
                 prompt_templates, context_length=CONTEXT_LENGTH):
        self.class_names = class_names
        self.prompt_normal = prompt_normal
        self.prompt_abnormal = prompt_abnormal
        self.prompt_templates = prompt_templates
        self.context_length = context_length

        # Deterministic synthetic "text model" parameters.
        # TODO(synk): the pretrained CLIP transformer text encoder has no
        #             in-script equivalent; replaced by embed->pool->project.
        key = jax.random.PRNGKey(0)
        k_tab, k_proj = jax.random.split(key)
        self.tok_table = jax.random.normal(k_tab, (VOCAB, WIDTH), jnp.float32) * 0.02
        self.w_proj = jax.random.normal(k_proj, (WIDTH, EMBED), jnp.float32) * (WIDTH ** -0.5)

        self.text_features = self._encode_prompt()      # (2 * n_classes, D)

    def _build_groups(self):
        """Embedded token groups, shape (G, P, L, W); G = 2 * n_classes."""
        # TODO(synk): for realistic CLIP sizes (L=77, W=512+, thousands of
        #             prompts) the token-embedding gather should be fused into
        #             the kernel via PrefetchScalarGridSpec instead of
        #             materializing (G, P, L, W) in HBM.
        groups = []
        for state_prompts in (self.prompt_normal, self.prompt_abnormal):
            for obj in self.class_names:
                prompted_state = [s.format(obj) for s in state_prompts]
                sentences = [tpl.format(s)
                             for s in prompted_state
                             for tpl in self.prompt_templates]
                toks = simple_tokenize(sentences, self.context_length)   # (P, L)
                groups.append(self.tok_table[toks])                      # (P, L, W) gather = glue
        return jnp.stack(groups)                                         # (G, P, L, W)

    def _encode_prompt(self):
        x_emb = self._build_groups()
        return encode_prompt_pallas(x_emb, self.w_proj)

    def __call__(self):
        return self.text_features


# Pure-JAX f32 reference (mirrors the PyTorch encode_prompt math) for validation.
def _reference(x_emb, w_proj):
    pooled = jnp.mean(x_emb, axis=2)                    # (G, P, W)
    emb = jnp.einsum("gpw,wd->gpd", pooled, w_proj,
                     precision=jax.lax.Precision.HIGHEST)   # (G, P, D)
    emb = emb / jnp.linalg.norm(emb, axis=-1, keepdims=True)
    mean = jnp.mean(emb, axis=1)                        # (G, D)
    return mean / jnp.linalg.norm(mean, axis=-1, keepdims=True)


if __name__ == "__main__":
    class_names = ["bottle", "cable"]
    prompt_normal = ["a photo of a flawless {}", "{} without defect"]
    prompt_abnormal = ["a photo of a damaged {}", "{} with defect"]
    prompt_templates = ["a photo of a {}.", "a blurry photo of the {}."]

    enc = PromptEncoder(class_names, prompt_normal, prompt_abnormal, prompt_templates)
    feats = enc()                                       # forward(): returns buffer
    jax.block_until_ready(feats)

    # sanity-check against the plain-JAX f32 reference (bf16 MXU operands ->
    # looser tolerance than the previous all-f32 version).
    x_emb = enc._build_groups()
    ref = _reference(x_emb, enc.w_proj)
    np.testing.assert_allclose(np.asarray(feats), np.asarray(ref),
                               rtol=2e-2, atol=2e-2)
    assert feats.shape == (2 * len(class_names), EMBED)
    assert bool(jnp.all(jnp.isfinite(feats)))

    print("KERNEL_OK")
</pallas_src>

<mosaic_0001>
module attributes {stable_mosaic.version = 11 : i64} {
  func.func @kernel(%arg0: i32, %arg1: memref<16x128xbf16, #tpu.memory_space<vmem>>, %arg2: memref<128x128xbf16, #tpu.memory_space<vmem>>, %arg3: memref<4x128xf32, #tpu.memory_space<vmem>>) attributes {dimension_semantics = [#tpu.dimension_semantics<parallel>], iteration_bounds = array<i64: 1>, scalar_prefetch = 0 : i64, scratch_operands = 0 : i64, tpu.core_type = #tpu.core_type<tc>, window_params = [{transform_indices = @transform_0, window_bounds = array<i64: 16, 128>}, {pipeline_mode = #tpu.pipeline_mode<synchronous>, transform_indices = @transform_1, window_bounds = array<i64: 128, 128>}, {transform_indices = @transform_2, window_bounds = array<i64: 4, 128>}]} {
    %c0 = arith.constant 0 : index
    %c0_0 = arith.constant 0 : index
    %0 = vector.load %arg1[%c0, %c0_0] : memref<16x128xbf16, #tpu.memory_space<vmem>>, vector<16x128xbf16>
    %c0_1 = arith.constant 0 : index
    %c0_2 = arith.constant 0 : index
    %1 = vector.load %arg2[%c0_1, %c0_2] : memref<128x128xbf16, #tpu.memory_space<vmem>>, vector<128x128xbf16>
    %cst = arith.constant dense<0.000000e+00> : vector<16x128xf32>
    %2 = tpu.matmul %0, %1, %cst {dimension_numbers = #tpu.dot_dimension_numbers<[1], [0], [0], [1], [0, 0, 1, 1], [], []>} : vector<16x128xbf16>, vector<128x128xbf16>, vector<16x128xf32> -> vector<16x128xf32>
    %3 = arith.mulf %2, %2 : vector<16x128xf32>
    %cst_3 = arith.constant dense<0.000000e+00> : vector<16xf32>
    %4 = vector.multi_reduction <add>, %3, %cst_3 [1] : vector<16x128xf32> to vector<16xf32>
    %5 = vector.shape_cast %4 : vector<16xf32> to vector<16x1xf32>
    %cst_4 = arith.constant 9.99999996E-13 : f32
    %6 = vector.broadcast %cst_4 : f32 to vector<16x1xf32>
    %7 = arith.addf %5, %6 : vector<16x1xf32>
    %8 = math.rsqrt %7 : vector<16x1xf32>
    %9 = vector.broadcast %8 : vector<16x1xf32> to vector<16x128xf32>
    %10 = arith.mulf %2, %9 : vector<16x128xf32>
    %11 = vector.shape_cast %10 : vector<16x128xf32> to vector<4x4x128xf32>
    %cst_5 = arith.constant dense<0.000000e+00> : vector<4x128xf32>
    %12 = vector.multi_reduction <add>, %11, %cst_5 [1] : vector<4x4x128xf32> to vector<4x128xf32>
    %13 = arith.mulf %12, %12 : vector<4x128xf32>
    %cst_6 = arith.constant dense<0.000000e+00> : vector<4xf32>
    %14 = vector.multi_reduction <add>, %13, %cst_6 [1] : vector<4x128xf32> to vector<4xf32>
    %15 = vector.shape_cast %14 : vector<4xf32> to vector<4x1xf32>
    %cst_7 = arith.constant 9.99999996E-13 : f32
    %16 = vector.broadcast %cst_7 : f32 to vector<4x1xf32>
    %17 = arith.addf %15, %16 : vector<4x1xf32>
    %18 = math.rsqrt %17 : vector<4x1xf32>
    %19 = vector.broadcast %18 : vector<4x1xf32> to vector<4x128xf32>
    %20 = arith.mulf %12, %19 : vector<4x128xf32>
    %c0_8 = arith.constant 0 : index
    %c0_9 = arith.constant 0 : index
    %21 = vector.load %arg3[%c0_8, %c0_9] : memref<4x128xf32, #tpu.memory_space<vmem>>, vector<4x128xf32>
    tpu.vector_store %arg3[%c0_8, %c0_9], %20 {strides = array<i32>} : memref<4x128xf32, #tpu.memory_space<vmem>>, vector<4x128xf32>,
    return
  }
  func.func @transform_0(%arg0: i32) -> (i32, i32) {
    %c0_i32 = arith.constant 0 : i32
    %c0_i32_0 = arith.constant 0 : i32
    return %arg0, %c0_i32 : i32, i32
  }
  func.func @transform_1(%arg0: i32) -> (i32, i32) {
    %c0_i32 = arith.constant 0 : i32
    %c0_i32_0 = arith.constant 0 : i32
    %c0_i32_1 = arith.constant 0 : i32
    return %c0_i32, %c0_i32_0 : i32, i32
  }
  func.func @transform_2(%arg0: i32) -> (i32, i32) {
    %c0_i32 = arith.constant 0 : i32
    %c0_i32_0 = arith.constant 0 : i32
    return %arg0, %c0_i32 : i32, i32
  }
}

module attributes {stable_mosaic.version = 11 : i64} {
  func.func @kernel(%arg0: i32, %arg1: memref<16x128xbf16, #tpu.memory_space<vmem>>, %arg2: memref<128x128xbf16, #tpu.memory_space<vmem>>, %arg3: memref<4x128xf32, #tpu.memory_space<vmem>>) attributes {dimension_semantics = [#tpu.dimension_semantics<parallel>], iteration_bounds = array<i64: 1>, scalar_prefetch = 0 : i64, scratch_operands = 0 : i64, tpu.core_type = #tpu.core_type<tc>, window_params = [{transform_indices = @transform_0, window_bounds = array<i64: 16, 128>}, {pipeline_mode = #tpu.pipeline_mode<synchronous>, transform_indices = @transform_1, window_bounds = array<i64: 128, 128>}, {transform_indices = @transform_2, window_bounds = array<i64: 4, 128>}]} {
    %c0 = arith.constant 0 : index
    %c0_0 = arith.constant 0 : index
    %0 = vector.load %arg1[%c0, %c0_0] : memref<16x128xbf16, #tpu.memory_space<vmem>>, vector<16x128xbf16>
    %c0_1 = arith.constant 0 : index
    %c0_2 = arith.constant 0 : index
    %1 = vector.load %arg2[%c0_1, %c0_2] : memref<128x128xbf16, #tpu.memory_space<vmem>>, vector<128x128xbf16>
    %cst = arith.constant dense<0.000000e+00> : vector<16x128xf32>
    %2 = tpu.matmul %0, %1, %cst {dimension_numbers = #tpu.dot_dimension_numbers<[1], [0], [0], [1], [0, 0, 1, 1], [], []>} : vector<16x128xbf16>, vector<128x128xbf16>, vector<16x128xf32> -> vector<16x128xf32>
    %3 = arith.mulf %2, %2 : vector<16x128xf32>
    %cst_3 = arith.constant dense<0.000000e+00> : vector<16xf32>
    %4 = vector.multi_reduction <add>, %3, %cst_3 [1] : vector<16x128xf32> to vector<16xf32>
    %5 = vector.shape_cast %4 : vector<16xf32> to vector<16x1xf32>
    %cst_4 = arith.constant 9.99999996E-13 : f32
    %6 = vector.broadcast %cst_4 : f32 to vector<16x1xf32>
    %7 = arith.addf %5, %6 : vector<16x1xf32>
    %8 = math.rsqrt %7 : vector<16x1xf32>
    %9 = vector.broadcast %8 : vector<16x1xf32> to vector<16x128xf32>
    %10 = arith.mulf %2, %9 : vector<16x128xf32>
    %11 = vector.shape_cast %10 : vector<16x128xf32> to vector<4x4x128xf32>
    %cst_5 = arith.constant dense<0.000000e+00> : vector<4x128xf32>
    %12 = vector.multi_reduction <add>, %11, %cst_5 [1] : vector<4x4x128xf32> to vector<4x128xf32>
    %13 = arith.mulf %12, %12 : vector<4x128xf32>
    %cst_6 = arith.constant dense<0.000000e+00> : vector<4xf32>
    %14 = vector.multi_reduction <add>, %13, %cst_6 [1] : vector<4x128xf32> to vector<4xf32>
    %15 = vector.shape_cast %14 : vector<4xf32> to vector<4x1xf32>
    %cst_7 = arith.constant 9.99999996E-13 : f32
    %16 = vector.broadcast %cst_7 : f32 to vector<4x1xf32>
    %17 = arith.addf %15, %16 : vector<4x1xf32>
    %18 = math.rsqrt %17 : vector<4x1xf32>
    %19 = vector.broadcast %18 : vector<4x1xf32> to vector<4x128xf32>
    %20 = arith.mulf %12, %19 : vector<4x128xf32>
    %c0_8 = arith.constant 0 : index
    %c0_9 = arith.constant 0 : index
    %21 = vector.load %arg3[%c0_8, %c0_9] : memref<4x128xf32, #tpu.memory_space<vmem>>, vector<4x128xf32>
    tpu.vector_store %arg3[%c0_8, %c0_9], %20 {strides = array<i32>} : memref<4x128xf32, #tpu.memory_space<vmem>>, vector<4x128xf32>,
    return
  }
  func.func @transform_0(%arg0: i32) -> (i32, i32) {
    %c0_i32 = arith.constant 0 : i32
    %c0_i32_0 = arith.constant 0 : i32
    return %arg0, %c0_i32 : i32, i32
  }
  func.func @transform_1(%arg0: i32) -> (i32, i32) {
    %c0_i32 = arith.constant 0 : i32
    %c0_i32_0 = arith.constant 0 : i32
    %c0_i32_1 = arith.constant 0 : i32
    return %c0_i32, %c0_i32_0 : i32, i32
  }
  func.func @transform_2(%arg0: i32) -> (i32, i32) {
    %c0_i32 = arith.constant 0 : i32
    %c0_i32_0 = arith.constant 0 : i32
    return %arg0, %c0_i32 : i32, i32
  }
}

</mosaic_0001>

<llo_original>
// kernel: tpu_custom_call.1
$region0: #{tpu_custom_call.1}
  #allocation0 [shape = 'u32[]', space=smem, size = 0x4, offset = 0x4, fixed_abs, tag = 'smem constant byte address 0x4 - core index']
  #allocation1 [shape = 'u32[144,128]{1,0:T(1,128)}', space=vmem, size = 0x12000, scoped, tag = 'internal scratch']
  %s0 = inlined_call_operand.hbm [shape: bf16[16,128], index: 0, kind: input, shape index: {}]
  %s1 = inlined_call_operand.hbm [shape: bf16[128,128], index: 1, kind: input, shape index: {}]
  %s2 = inlined_call_operand.hbm [shape: f32[4,128], index: 2, kind: output, shape index: {}]
  %s3 = sld [smem:[#allocation0]]
  $region26: #{tpu_custom_call.1} parent=0
    _
  %s5 = ssub.s32 1, %s3
  %s6 = scalar_select 0, %s5, %s3
  $region1: #{tpu_custom_call.1} parent=0
    #allocation2 [shape = 'u8[4096]{0}', space=vmem, size = 0x1000, scoped, tag = 'input window, operand 0, single buffered']
    #allocation3 [shape = 's32[1]{0}', space=sflag, size = 0x4, scoped, tag = 'scoped memory for tpu_custom_call.1']
    #allocation4 [shape = 's32[1]{0}', space=sflag, size = 0x4, scoped, tag = 'scoped memory for tpu_custom_call.1']
    #allocation5 [shape = 'u8[32768]{0}', space=vmem, size = 0x8000, scoped, tag = 'input window, operand 1, single buffered']
    #allocation6 [shape = 's32[1]{0}', space=sflag, size = 0x4, scoped, tag = 'scoped memory for tpu_custom_call.1']
    #allocation7 [shape = 'u8[2048]{0}', space=vmem, size = 0x800, scoped, tag = 'output window, operand 0, single buffered']
    %7 = vsyncpa [#allocation3], 0
    %8 = vsyncpa [#allocation6], 0
    %9 = vsyncpa [#allocation4], 0
    // Predicated region
    $region2: #{tpu_custom_call.1} parent=1 // pred_check
      _
    $region3: #{tpu_custom_call.1} parent=1 // pred_check_branch
      %11 = sbr.rel (0) target = $region5
    $region4: #{tpu_custom_call.1} parent=1 // pred_region
      %s13 = ssub.s32 128, 128
      %14 = vsyncadd [#allocation3], %s13
      %s15 = sshll.u32 [#allocation2], 4
      %s16 = int_to_ptr.vmem [resolvable:$true] %s15
      %21 = dma.hbm_to_vmem [thread:$0]  %s0, 128, %s16, [#allocation3], 64, 64, 4
    $region5: #{tpu_custom_call.1} parent=1 // pred_fallthru
      _
    // Predicated region
    $region6: #{tpu_custom_call.1} parent=1 // pred_check
      _
    $region7: #{tpu_custom_call.1} parent=1 // pred_check_branch
      %23 = sbr.rel (0) target = $region9
    $region8: #{tpu_custom_call.1} parent=1 // pred_region
      %s25 = ssub.s32 1024, 1024
      %26 = vsyncadd [#allocation6], %s25
      %s27 = sshll.u32 [#allocation5], 4
      %s28 = int_to_ptr.vmem [resolvable:$true] %s27
      %33 = dma.hbm_to_vmem [thread:$0]  %s1, 1024, %s28, [#allocation6], 64, 64, 4
    $region9: #{tpu_custom_call.1} parent=1 // pred_fallthru
      _
    // Predicated region
    $region10: #{tpu_custom_call.1} parent=1 // pred_check
      _
    $region11: #{tpu_custom_call.1} parent=1 // pred_check_branch
      %35 = sbr.rel (0) target = $region13
    $region12: #{tpu_custom_call.1} parent=1 // pred_region
      %36 = dma.done [#allocation3], 128
    $region13: #{tpu_custom_call.1} parent=1 // pred_fallthru
      _
    // Predicated region
    $region14: #{tpu_custom_call.1} parent=1 // pred_check
      _
    $region15: #{tpu_custom_call.1} parent=1 // pred_check_branch
      %38 = sbr.rel (0) target = $region17
    $region16: #{tpu_custom_call.1} parent=1 // pred_region
      %39 = dma.done [#allocation6], 1024
    $region17: #{tpu_custom_call.1} parent=1 // pred_fallthru
      _
    %v41 = vld [vmem:[#allocation2] sm:$0xf]
    %v42 = vld [vmem:[#allocation2 + $0x4] sm:$0xf]
    %v43 = vld [vmem:[#allocation5] sm:$0xf]
    %v44 = vld [vmem:[#allocation5 + $0x4] sm:$0xf]
    %v45 = vld [vmem:[#allocation5 + $0x8] sm:$0xf]
    %v46 = vld [vmem:[#allocation5 + $0xc] sm:$0xf]
    %v47 = vld [vmem:[#allocation5 + $0x10] sm:$0xf]
    %v48 = vld [vmem:[#allocation5 + $0x14] sm:$0xf]
    %v49 = vld [vmem:[#allocation5 + $0x18] sm:$0xf]
    %v50 = vld [vmem:[#allocation5 + $0x1c] sm:$0xf]
    %v51 = vld [vmem:[#allocation5 + $0x20] sm:$0xf]
    %v52 = vld [vmem:[#allocation5 + $0x24] sm:$0xf]
    %v53 = vld [vmem:[#allocation5 + $0x28] sm:$0xf]
    %v54 = vld [vmem:[#allocation5 + $0x2c] sm:$0xf]
    %v55 = vld [vmem:[#allocation5 + $0x30] sm:$0xf]
    %v56 = vld [vmem:[#allocation5 + $0x34] sm:$0xf]
    %v57 = vld [vmem:[#allocation5 + $0x38] sm:$0xf]
    %v58 = vld [vmem:[#allocation5 + $0x3c] sm:$0xf]
    %v61 = vunpack.c.l.b16 %v41
    %v62 = vunpack.c.l.b16 %v42
    %v63 = vpack.c.b16 %v62, %v61
    %v81 = vunpack.c.l.b16 %v43
    %v82 = vunpack.c.l.b16 %v44
    %v83 = vunpack.c.l.b16 %v45
    %v84 = vunpack.c.l.b16 %v46
    %v85 = vunpack.c.l.b16 %v47
    %v86 = vunpack.c.l.b16 %v48
    %v87 = vunpack.c.l.b16 %v49
    %v88 = vunpack.c.l.b16 %v50
    %v89 = vunpack.c.l.b16 %v51
    %v90 = vunpack.c.l.b16 %v52
    %v91 = vunpack.c.l.b16 %v53
    %v92 = vunpack.c.l.b16 %v54
    %v93 = vunpack.c.l.b16 %v55
    %v94 = vunpack.c.l.b16 %v56
    %v95 = vunpack.c.l.b16 %v57
    %v96 = vunpack.c.l.b16 %v58
    %v97 = vpack.c.b16 %v82, %v81
    %v98 = vpack.c.b16 %v84, %v83
    %v99 = vpack.c.b16 %v86, %v85
    %v100 = vpack.c.b16 %v88, %v87
    %v101 = vpack.c.b16 %v90, %v89
    %v102 = vpack.c.b16 %v92, %v91
    %v103 = vpack.c.b16 %v94, %v93
    %v104 = vpack.c.b16 %v96, %v95
    %113 = vmatprep.subr.bf16.mxu0 0
    %114 = vmatpush1.bf16.msra.mxu0 %v97
    %115 = vmatprep.subr.bf16.mxu0 0
    %116 = vmatpush1.bf16.msra.mxu0 %v98
    %117 = vmatprep.subr.bf16.mxu0 0
    %118 = vmatpush1.bf16.msra.mxu0 %v99
    %119 = vmatprep.subr.bf16.mxu0 0
    %120 = vmatpush1.bf16.msra.mxu0 %v100
    %121 = vmatprep.subr.bf16.mxu0 0
    %122 = vmatpush1.bf16.msra.mxu0 %v101
    %123 = vmatprep.subr.bf16.mxu0 0
    %124 = vmatpush1.bf16.msra.mxu0 %v102
    %125 = vmatprep.subr.bf16.mxu0 0
    %126 = vmatpush1.bf16.msra.mxu0 %v103
    %127 = vmatprep.subr.bf16.mxu0 0
    %128 = vmatpush1.bf16.msra.mxu0 %v104
    %129 = vmatprep.subr.bf16.mxu0 0
    %130 = vmatpush1.bf16.msra.mxu0 0
    %131 = vmatprep.subr.bf16.mxu0 0
    %132 = vmatpush1.bf16.msra.mxu0 0
    %133 = vmatprep.subr.bf16.mxu0 0
    %134 = vmatpush1.bf16.msra.mxu0 0
    %135 = vmatprep.subr.bf16.mxu0 0
    %136 = vmatpush1.bf16.msra.mxu0 0
    %137 = vmatprep.subr.bf16.mxu0 0
    %138 = vmatpush1.bf16.msra.mxu0 0
    %139 = vmatprep.subr.bf16.mxu0 0
    %140 = vmatpush1.bf16.msra.mxu0 0
    %141 = vmatprep.subr.bf16.mxu0 0
    %142 = vmatpush1.bf16.msra.mxu0 0
    %143 = vmatprep.subr.bf16.mxu0 0
    %144 = vmatpush1.bf16.msra.mxu0 0
    %145 = vmatprep.mubr.bf16.mxu0 0
    %146 = vmatmul.mubr.bf16.gmra.mrb[0].mxu0 %v63
    %v147 = vpop.f32.mrb[0].mxu0
    %v148 = vadd.f32 0.0, %v147
    %v149 = vpop.f32.mrb[0].mxu0
    %v150 = vpop.f32.mrb[0].mxu0
    %v151 = vadd.f32 0.0, %v150
    %v152 = vpop.f32.mrb[0].mxu0
    %153 = vdwg.mxu0
    %v154 = vmul.f32 %v148, %v148
    %v155 = vmul.f32 %v151, %v151
    %156 = vadd.xlane.f32.xlu0 %v154
    %v157 = vpop.xlane.xlu0 %156
    %158 = vadd.xlane.f32.xlu0 %v155
    %v159 = vpop.xlane.xlu0 %158
    %v160 = vadd.f32 %v157, 1e-12
    %v161 = vadd.f32 %v159, 1e-12
    %v162 = vrsqrt.pop %v160
    %v163 = vrsqrt.pop %v161
    %v164 = vmul.f32 %v148, %v162
    %v165 = vmul.f32 %v151, %v163
    %v168 = vcombine.high %v164, %v164
    %v169 = vcombine.high %v165, %v165
    %vm172 = vcmask 1043456
    %v173 = vsel %vm172, %v164, 0.0
    %v174 = vrot.slane %v173, 4
    %v175 = vadd.f32 %v173, %v174
    %v176 = vrot.slane %v175, 2
    %v177 = vadd.f32 %v175, %v176
    %v178 = vrot.slane %v177, 1
    %v179 = vadd.f32 %v177, %v178
    %v180 = vsel %vm172, %v168, 0.0
    %v181 = vrot.slane %v180, 4
    %v182 = vadd.f32 %v180, %v181
    %v183 = vrot.slane %v182, 2
    %v184 = vadd.f32 %v182, %v183
    %v185 = vrot.slane %v184, 1
    %v186 = vadd.f32 %v184, %v185
    %v187 = vsel %vm172, %v165, 0.0
    %v188 = vrot.slane %v187, 4
    %v189 = vadd.f32 %v187, %v188
    %v190 = vrot.slane %v189, 2
    %v191 = vadd.f32 %v189, %v190
    %v192 = vrot.slane %v191, 1
    %v193 = vadd.f32 %v191, %v192
    %v194 = vsel %vm172, %v169, 0.0
    %v195 = vrot.slane %v194, 4
    %v196 = vadd.f32 %v194, %v195
    %v197 = vrot.slane %v196, 2
    %v198 = vadd.f32 %v196, %v197
    %v199 = vrot.slane %v198, 1
    %v200 = vadd.f32 %v198, %v199
    %v201 = vmul.f32 %v179, %v179
    %v202 = vmul.f32 %v186, %v186
    %v203 = vmul.f32 %v193, %v193
    %v204 = vmul.f32 %v200, %v200
    %vm209 = vcmask 1041409
    %v210 = vsel %vm209, %v202, %v201
    %vm211 = vcmask 1042434
    %v212 = vsel %vm211, %v203, %v210
    %vm213 = vcmask 1043459
    %v214 = vsel %vm213, %v204, %v212
    %v216 = vsel %vm172, %v214, 0.0
    %217 = vadd.xlane.f32.xlu0 %v216
    %v218 = vpop.xlane.xlu0 %217
    %v219 = vadd.f32 %v218, 1e-12
    %v220 = vrsqrt.pop %v219
    %v222 = vrot.slane %v220, 1
    %v223 = vrot.slane %v220, 2
    %v224 = vrot.slane %v220, 3
    %v229 = vmul.f32 %v179, %v220
    %v230 = vmul.f32 %v186, %v222
    %v231 = vmul.f32 %v193, %v223
    %v232 = vmul.f32 %v200, %v224
    %v237 = vrot.slane %v230, 7
    %v238 = vsel %vm209, %v237, %v229
    %v239 = vrot.slane %v231, 6
    %v240 = vsel %vm211, %v239, %v238
    %v241 = vrot.slane %v232, 5
    %v242 = vsel %vm213, %v241, %v240
    %244 = vst [vmem:[#allocation7] sm:$0xf] %v242
    // Predicated region
    $region18: #{tpu_custom_call.1} parent=1 // pred_check
      _
    $region19: #{tpu_custom_call.1} parent=1 // pred_check_branch
      %246 = sbr.rel (0) target = $region21
    $region20: #{tpu_custom_call.1} parent=1 // pred_region
      %s248 = ssub.s32 64, 64
      %249 = vsyncadd [#allocation4], %s248
      %s251 = sshll.u32 [#allocation7], 4
      %s252 = int_to_ptr.vmem [resolvable:$true] %s251
      %254 = dma.vmem_to_hbm [thread:$0]  %s252, 64, %s2, [#allocation4]
    $region21: #{tpu_custom_call.1} parent=1 // pred_fallthru
      _
    // Predicated region
    $region22: #{tpu_custom_call.1} parent=1 // pred_check
      _
    $region23: #{tpu_custom_call.1} parent=1 // pred_check_branch
      %256 = sbr.rel (0) target = $region25
    $region24: #{tpu_custom_call.1} parent=1 // pred_region
      %257 = dma.done [#allocation4], 64
    $region25: #{tpu_custom_call.1} parent=1 // pred_fallthru
      _
    %258 = vsyncpa [#allocation3], 1
    %259 = vsyncpa [#allocation6], 1
    %260 = vsyncpa [#allocation4], 1

// kernel: tpu_custom_call.1
$region0: #{tpu_custom_call.1}
  #allocation0 [shape = 'u32[]', space=smem, size = 0x4, offset = 0x4, fixed_abs, tag = 'smem constant byte address 0x4 - core index']
  #allocation1 [shape = 'u32[144,128]{1,0:T(1,128)}', space=vmem, size = 0x12000, scoped, tag = 'internal scratch']
  %s0 = inlined_call_operand.hbm [shape: bf16[16,128], index: 0, kind: input, shape index: {}]
  %s1 = inlined_call_operand.hbm [shape: bf16[128,128], index: 1, kind: input, shape index: {}]
  %s2 = inlined_call_operand.hbm [shape: f32[4,128], index: 2, kind: output, shape index: {}]
  %s3 = sld [smem:[#allocation0]]
  $region26: #{tpu_custom_call.1} parent=0
    _
  %s5 = ssub.s32 1, %s3
  %s6 = scalar_select 0, %s5, %s3
  $region1: #{tpu_custom_call.1} parent=0
    #allocation2 [shape = 'u8[4096]{0}', space=vmem, size = 0x1000, scoped, tag = 'input window, operand 0, single buffered']
    #allocation3 [shape = 's32[1]{0}', space=sflag, size = 0x4, scoped, tag = 'scoped memory for tpu_custom_call.1']
    #allocation4 [shape = 's32[1]{0}', space=sflag, size = 0x4, scoped, tag = 'scoped memory for tpu_custom_call.1']
    #allocation5 [shape = 'u8[32768]{0}', space=vmem, size = 0x8000, scoped, tag = 'input window, operand 1, single buffered']
    #allocation6 [shape = 's32[1]{0}', space=sflag, size = 0x4, scoped, tag = 'scoped memory for tpu_custom_call.1']
    #allocation7 [shape = 'u8[2048]{0}', space=vmem, size = 0x800, scoped, tag = 'output window, operand 0, single buffered']
    %7 = vsyncpa [#allocation3], 0
    %8 = vsyncpa [#allocation6], 0
    %9 = vsyncpa [#allocation4], 0
    // Predicated region
    $region2: #{tpu_custom_call.1} parent=1 // pred_check
      _
    $region3: #{tpu_custom_call.1} parent=1 // pred_check_branch
      %11 = sbr.rel (0) target = $region5
    $region4: #{tpu_custom_call.1} parent=1 // pred_region
      %s13 = ssub.s32 128, 128
      %14 = vsyncadd [#allocation3], %s13
      %s15 = sshll.u32 [#allocation2], 4
      %s16 = int_to_ptr.vmem [resolvable:$true] %s15
      %21 = dma.hbm_to_vmem [thread:$0]  %s0, 128, %s16, [#allocation3], 64, 64, 4
    $region5: #{tpu_custom_call.1} parent=1 // pred_fallthru
      _
    // Predicated region
    $region6: #{tpu_custom_call.1} parent=1 // pred_check
      _
    $region7: #{tpu_custom_call.1} parent=1 // pred_check_branch
      %23 = sbr.rel (0) target = $region9
    $region8: #{tpu_custom_call.1} parent=1 // pred_region
      %s25 = ssub.s32 1024, 1024
      %26 = vsyncadd [#allocation6], %s25
      %s27 = sshll.u32 [#allocation5], 4
      %s28 = int_to_ptr.vmem [resolvable:$true] %s27
      %33 = dma.hbm_to_vmem [thread:$0]  %s1, 1024, %s28, [#allocation6], 64, 64, 4
    $region9: #{tpu_custom_call.1} parent=1 // pred_fallthru
      _
    // Predicated region
    $region10: #{tpu_custom_call.1} parent=1 // pred_check
      _
    $region11: #{tpu_custom_call.1} parent=1 // pred_check_branch
      %35 = sbr.rel (0) target = $region13
    $region12: #{tpu_custom_call.1} parent=1 // pred_region
      %36 = dma.done [#allocation3], 128
    $region13: #{tpu_custom_call.1} parent=1 // pred_fallthru
      _
    // Predicated region
    $region14: #{tpu_custom_call.1} parent=1 // pred_check
      _
    $region15: #{tpu_custom_call.1} parent=1 // pred_check_branch
      %38 = sbr.rel (0) target = $region17
    $region16: #{tpu_custom_call.1} parent=1 // pred_region
      %39 = dma.done [#allocation6], 1024
    $region17: #{tpu_custom_call.1} parent=1 // pred_fallthru
      _
    %v41 = vld [vmem:[#allocation2] sm:$0xf]
    %v42 = vld [vmem:[#allocation2 + $0x4] sm:$0xf]
    %v43 = vld [vmem:[#allocation5] sm:$0xf]
    %v44 = vld [vmem:[#allocation5 + $0x4] sm:$0xf]
    %v45 = vld [vmem:[#allocation5 + $0x8] sm:$0xf]
    %v46 = vld [vmem:[#allocation5 + $0xc] sm:$0xf]
    %v47 = vld [vmem:[#allocation5 + $0x10] sm:$0xf]
    %v48 = vld [vmem:[#allocation5 + $0x14] sm:$0xf]
    %v49 = vld [vmem:[#allocation5 + $0x18] sm:$0xf]
    %v50 = vld [vmem:[#allocation5 + $0x1c] sm:$0xf]
    %v51 = vld [vmem:[#allocation5 + $0x20] sm:$0xf]
    %v52 = vld [vmem:[#allocation5 + $0x24] sm:$0xf]
    %v53 = vld [vmem:[#allocation5 + $0x28] sm:$0xf]
    %v54 = vld [vmem:[#allocation5 + $0x2c] sm:$0xf]
    %v55 = vld [vmem:[#allocation5 + $0x30] sm:$0xf]
    %v56 = vld [vmem:[#allocation5 + $0x34] sm:$0xf]
    %v57 = vld [vmem:[#allocation5 + $0x38] sm:$0xf]
    %v58 = vld [vmem:[#allocation5 + $0x3c] sm:$0xf]
    %v61 = vunpack.c.l.b16 %v41
    %v62 = vunpack.c.l.b16 %v42
    %v63 = vpack.c.b16 %v62, %v61
    %v81 = vunpack.c.l.b16 %v43
    %v82 = vunpack.c.l.b16 %v44
    %v83 = vunpack.c.l.b16 %v45
    %v84 = vunpack.c.l.b16 %v46
    %v85 = vunpack.c.l.b16 %v47
    %v86 = vunpack.c.l.b16 %v48
    %v87 = vunpack.c.l.b16 %v49
    %v88 = vunpack.c.l.b16 %v50
    %v89 = vunpack.c.l.b16 %v51
    %v90 = vunpack.c.l.b16 %v52
    %v91 = vunpack.c.l.b16 %v53
    %v92 = vunpack.c.l.b16 %v54
    %v93 = vunpack.c.l.b16 %v55
    %v94 = vunpack.c.l.b16 %v56
    %v95 = vunpack.c.l.b16 %v57
    %v96 = vunpack.c.l.b16 %v58
    %v97 = vpack.c.b16 %v82, %v81
    %v98 = vpack.c.b16 %v84, %v83
    %v99 = vpack.c.b16 %v86, %v85
    %v100 = vpack.c.b16 %v88, %v87
    %v101 = vpack.c.b16 %v90, %v89
    %v102 = vpack.c.b16 %v92, %v91
    %v103 = vpack.c.b16 %v94, %v93
    %v104 = vpack.c.b16 %v96, %v95
    %113 = vmatprep.subr.bf16.mxu0 0
    %114 = vmatpush1.bf16.msra.mxu0 %v97
    %115 = vmatprep.subr.bf16.mxu0 0
    %116 = vmatpush1.bf16.msra.mxu0 %v98
    %117 = vmatprep.subr.bf16.mxu0 0
    %118 = vmatpush1.bf16.msra.mxu0 %v99
    %119 = vmatprep.subr.bf16.mxu0 0
    %120 = vmatpush1.bf16.msra.mxu0 %v100
    %121 = vmatprep.subr.bf16.mxu0 0
    %122 = vmatpush1.bf16.msra.mxu0 %v101
    %123 = vmatprep.subr.bf16.mxu0 0
    %124 = vmatpush1.bf16.msra.mxu0 %v102
    %125 = vmatprep.subr.bf16.mxu0 0
    %126 = vmatpush1.bf16.msra.mxu0 %v103
    %127 = vmatprep.subr.bf16.mxu0 0
    %128 = vmatpush1.bf16.msra.mxu0 %v104
    %129 = vmatprep.subr.bf16.mxu0 0
    %130 = vmatpush1.bf16.msra.mxu0 0
    %131 = vmatprep.subr.bf16.mxu0 0
    %132 = vmatpush1.bf16.msra.mxu0 0
    %133 = vmatprep.subr.bf16.mxu0 0
    %134 = vmatpush1.bf16.msra.mxu0 0
    %135 = vmatprep.subr.bf16.mxu0 0
    %136 = vmatpush1.bf16.msra.mxu0 0
    %137 = vmatprep.subr.bf16.mxu0 0
    %138 = vmatpush1.bf16.msra.mxu0 0
    %139 = vmatprep.subr.bf16.mxu0 0
    %140 = vmatpush1.bf16.msra.mxu0 0
    %141 = vmatprep.subr.bf16.mxu0 0
    %142 = vmatpush1.bf16.msra.mxu0 0
    %143 = vmatprep.subr.bf16.mxu0 0
    %144 = vmatpush1.bf16.msra.mxu0 0
    %145 = vmatprep.mubr.bf16.mxu0 0
    %146 = vmatmul.mubr.bf16.gmra.mrb[0].mxu0 %v63
    %v147 = vpop.f32.mrb[0].mxu0
    %v148 = vadd.f32 0.0, %v147
    %v149 = vpop.f32.mrb[0].mxu0
    %v150 = vpop.f32.mrb[0].mxu0
    %v151 = vadd.f32 0.0, %v150
    %v152 = vpop.f32.mrb[0].mxu0
    %153 = vdwg.mxu0
    %v154 = vmul.f32 %v148, %v148
    %v155 = vmul.f32 %v151, %v151
    %156 = vadd.xlane.f32.xlu0 %v154
    %v157 = vpop.xlane.xlu0 %156
    %158 = vadd.xlane.f32.xlu0 %v155
    %v159 = vpop.xlane.xlu0 %158
    %v160 = vadd.f32 %v157, 1e-12
    %v161 = vadd.f32 %v159, 1e-12
    %v162 = vrsqrt.pop %v160
    %v163 = vrsqrt.pop %v161
    %v164 = vmul.f32 %v148, %v162
    %v165 = vmul.f32 %v151, %v163
    %v168 = vcombine.high %v164, %v164
    %v169 = vcombine.high %v165, %v165
    %vm172 = vcmask 1043456
    %v173 = vsel %vm172, %v164, 0.0
    %v174 = vrot.slane %v173, 4
    %v175 = vadd.f32 %v173, %v174
    %v176 = vrot.slane %v175, 2
    %v177 = vadd.f32 %v175, %v176
    %v178 = vrot.slane %v177, 1
    %v179 = vadd.f32 %v177, %v178
    %v180 = vsel %vm172, %v168, 0.0
    %v181 = vrot.slane %v180, 4
    %v182 = vadd.f32 %v180, %v181
    %v183 = vrot.slane %v182, 2
    %v184 = vadd.f32 %v182, %v183
    %v185 = vrot.slane %v184, 1
    %v186 = vadd.f32 %v184, %v185
    %v187 = vsel %vm172, %v165, 0.0
    %v188 = vrot.slane %v187, 4
    %v189 = vadd.f32 %v187, %v188
    %v190 = vrot.slane %v189, 2
    %v191 = vadd.f32 %v189, %v190
    %v192 = vrot.slane %v191, 1
    %v193 = vadd.f32 %v191, %v192
    %v194 = vsel %vm172, %v169, 0.0
    %v195 = vrot.slane %v194, 4
    %v196 = vadd.f32 %v194, %v195
    %v197 = vrot.slane %v196, 2
    %v198 = vadd.f32 %v196, %v197
    %v199 = vrot.slane %v198, 1
    %v200 = vadd.f32 %v198, %v199
    %v201 = vmul.f32 %v179, %v179
    %v202 = vmul.f32 %v186, %v186
    %v203 = vmul.f32 %v193, %v193
    %v204 = vmul.f32 %v200, %v200
    %vm209 = vcmask 1041409
    %v210 = vsel %vm209, %v202, %v201
    %vm211 = vcmask 1042434
    %v212 = vsel %vm211, %v203, %v210
    %vm213 = vcmask 1043459
    %v214 = vsel %vm213, %v204, %v212
    %v216 = vsel %vm172, %v214, 0.0
    %217 = vadd.xlane.f32.xlu0 %v216
    %v218 = vpop.xlane.xlu0 %217
    %v219 = vadd.f32 %v218, 1e-12
    %v220 = vrsqrt.pop %v219
    %v222 = vrot.slane %v220, 1
    %v223 = vrot.slane %v220, 2
    %v224 = vrot.slane %v220, 3
    %v229 = vmul.f32 %v179, %v220
    %v230 = vmul.f32 %v186, %v222
    %v231 = vmul.f32 %v193, %v223
    %v232 = vmul.f32 %v200, %v224
    %v237 = vrot.slane %v230, 7
    %v238 = vsel %vm209, %v237, %v229
    %v239 = vrot.slane %v231, 6
    %v240 = vsel %vm211, %v239, %v238
    %v241 = vrot.slane %v232, 5
    %v242 = vsel %vm213, %v241, %v240
    %244 = vst [vmem:[#allocation7] sm:$0xf] %v242
    // Predicated region
    $region18: #{tpu_custom_call.1} parent=1 // pred_check
      _
    $region19: #{tpu_custom_call.1} parent=1 // pred_check_branch
      %246 = sbr.rel (0) target = $region21
    $region20: #{tpu_custom_call.1} parent=1 // pred_region
      %s248 = ssub.s32 64, 64
      %249 = vsyncadd [#allocation4], %s248
      %s251 = sshll.u32 [#allocation7], 4
      %s252 = int_to_ptr.vmem [resolvable:$true] %s251
      %254 = dma.vmem_to_hbm [thread:$0]  %s252, 64, %s2, [#allocation4]
    $region21: #{tpu_custom_call.1} parent=1 // pred_fallthru
      _
    // Predicated region
    $region22: #{tpu_custom_call.1} parent=1 // pred_check
      _
    $region23: #{tpu_custom_call.1} parent=1 // pred_check_branch
      %256 = sbr.rel (0) target = $region25
    $region24: #{tpu_custom_call.1} parent=1 // pred_region
      %257 = dma.done [#allocation4], 64
    $region25: #{tpu_custom_call.1} parent=1 // pred_fallthru
      _
    %258 = vsyncpa [#allocation3], 1
    %259 = vsyncpa [#allocation6], 1
    %260 = vsyncpa [#allocation4], 1

</llo_original>
